<compile_context>
chip_gen: v7x
topology: tpu7x:2x2x1
jax: 0.10.0
libtpu: 0.0.40
codegen_flags: <defaults>
</compile_context>

<pallas_src>
import math

import jax
import jax.numpy as jnp
from jax.experimental import pallas as pl
from jax.experimental.pallas import tpu as pltpu

LOG_STD_MIN = -20.0
LOG_STD_MAX = 2.0
_HALF_LOG_2PI = 0.5 * math.log(2.0 * math.pi)
_LOG2 = math.log(2.0)


def _softplus(z):
    # numerically-stable softplus (matches torch.nn.functional.softplus)
    return jnp.maximum(z, 0.0) + jnp.log1p(jnp.exp(-jnp.abs(z)))


def actor_kernel(state_ref, eps_ref, w1_ref, w2h_ref, bias_ref, out_ref):
    """One fused forward pass for a batch tile.

    state_ref : (TB, obs)      f32
    eps_ref   : (TB, A)        f32
    w1_ref    : (obs, H)       bf16
    w2h_ref   : (H, H + 2A)    bf16   -- [w2 | w_mu | w_log_std]
    bias_ref  : (1, 2H + 2A)   f32    -- [b1 | b2 | b_mu | b_log_std]
    out_ref   : (TB, 2A + 1)   f32    -- [sample | mean | log_pi]
    """
    H = w1_ref.shape[1]
    A = eps_ref.shape[1]

    # ---- act_net: Linear -> ReLU -> Linear -> ReLU (bf16 MXU, f32 acc) ----
    x = state_ref[...].astype(jnp.bfloat16)
    h = jnp.dot(x, w1_ref[...], preferred_element_type=jnp.float32)
    h = jnp.maximum(h + bias_ref[:, :H], 0.0)

    w2h = w2h_ref[...]
    h2 = jnp.dot(h.astype(jnp.bfloat16), w2h[:, :H],
                 preferred_element_type=jnp.float32)
    h2 = jnp.maximum(h2 + bias_ref[:, H:2 * H], 0.0)

    # ---- fused mean / log_std heads: single (H, 2A) matmul ----
    head = jnp.dot(h2.astype(jnp.bfloat16), w2h[:, H:],
                   preferred_element_type=jnp.float32)
    head = head + bias_ref[:, 2 * H:]
    mu = head[:, :A]
    log_std = head[:, A:]

    # tanh-squash of log_std into [LOG_STD_MIN, LOG_STD_MAX]
    log_std = jnp.tanh(log_std)
    log_std = LOG_STD_MIN + 0.5 * (LOG_STD_MAX - LOG_STD_MIN) * (log_std + 1.0)
    std = jnp.exp(log_std)

    # SquashedNormal rsample: y = tanh(mu + std * eps)
    eps = eps_ref[...]
    u = mu + std * eps
    y = jnp.tanh(u)

    # log_prob(y) = Normal(mu, std).log_prob(u) - log|d tanh(u)/du|
    #   with u = mu + std*eps -> Normal lp = -0.5*eps^2 - log_std - 0.5*log(2pi)
    #   tanh log-det (torch TanhTransform): 2*(log 2 - u - softplus(-2u))
    base_lp = -0.5 * eps * eps - log_std - _HALF_LOG_2PI
    log_det = 2.0 * (_LOG2 - u - _softplus(-2.0 * u))
    log_pi = jnp.sum(base_lp - log_det, axis=-1, keepdims=True)

    # single lane-dense output slab: [sample | mean | log_pi]
    out_ref[...] = jnp.concatenate([y, jnp.tanh(mu), log_pi], axis=-1)


def base_actor_forward(state, eps, params, *, batch_tile=1024):
    """state: (B, obs_dim) f32, eps: (B, num_actions) f32.

    Returns (sample, log_pi, mean) exactly like BaseActor.forward.
    """
    B, obs = state.shape
    A = eps.shape[1]
    out_w = 2 * A + 1

    operands = (state, eps, params["w1"], params["w2h"], params["bias"])
    out_shape = jax.ShapeDtypeStruct((B, out_w), jnp.float32)

    if B <= batch_tile:
        # Small batch: no grid, everything VMEM-resident, single invocation.
        out = pl.pallas_call(
            actor_kernel,
            out_shape=out_shape,
            in_specs=[pl.BlockSpec(memory_space=pltpu.VMEM)
                      for _ in operands],
            out_specs=pl.BlockSpec(memory_space=pltpu.VMEM),
        )(*operands)
    else:
        # Large batch: tile the batch; weights stay resident (constant
        # index_map), parallel semantics shards across TensorCores (v7x)
        # and pipelines the state/eps/output DMAs.
        TB = batch_tile
        assert TB % 8 == 0, "batch tile must be a multiple of 8 (sublanes)"
        assert B % TB == 0, "pad batch to a multiple of batch_tile"
        grid = (B // TB,)
        in_specs = [
            pl.BlockSpec((TB, obs), lambda i: (i, 0)),
            pl.BlockSpec((TB, A), lambda i: (i, 0)),
            pl.BlockSpec(params["w1"].shape, lambda i: (0, 0)),
            pl.BlockSpec(params["w2h"].shape, lambda i: (0, 0)),
            pl.BlockSpec(params["bias"].shape, lambda i: (0, 0)),
        ]
        out_specs = pl.BlockSpec((TB, out_w), lambda i: (i, 0))
        out = pl.pallas_call(
            actor_kernel,
            out_shape=out_shape,
            grid=grid,
            in_specs=in_specs,
            out_specs=out_specs,
            compiler_params=pltpu.CompilerParams(
                dimension_semantics=("parallel",)),
        )(*operands)

    sample = out[:, :A]
    mean = out[:, A:2 * A]
    log_pi = out[:, 2 * A:]
    return sample, log_pi, mean


def init_params(key, obs_dim, hidden, num_actions):
    """PyTorch-style Linear init: U(-1/sqrt(fan_in), 1/sqrt(fan_in)).

    Weights stored transposed as (in, out); w2 and both head weights are
    packed into one (H, H + 2A) bf16 buffer, all biases into one f32 buffer.
    """
    ks = jax.random.split(key, 8)

    def lin(kw, kb, fan_in, fan_out):
        bound = 1.0 / math.sqrt(fan_in)
        w = jax.random.uniform(kw, (fan_in, fan_out), jnp.float32, -bound, bound)
        b = jax.random.uniform(kb, (1, fan_out), jnp.float32, -bound, bound)
        return w, b

    w1, b1 = lin(ks[0], ks[1], obs_dim, hidden)
    w2, b2 = lin(ks[2], ks[3], hidden, hidden)
    wmu, bmu = lin(ks[4], ks[5], hidden, num_actions)
    wls, bls = lin(ks[6], ks[7], hidden, num_actions)

    w2h = jnp.concatenate([w2, wmu, wls], axis=1)          # (H, H + 2A)
    bias = jnp.concatenate([b1, b2, bmu, bls], axis=1)     # (1, 2H + 2A)

    return dict(
        w1=w1.astype(jnp.bfloat16),
        w2h=w2h.astype(jnp.bfloat16),
        bias=bias.astype(jnp.float32),
    )


def reference_forward(state, eps, params):
    """Pure-JAX reference mirroring the kernel math (bf16 matmuls, f32 acc)."""
    w1, w2h, bias = params["w1"], params["w2h"], params["bias"]
    H = w1.shape[1]
    A = eps.shape[1]

    def mm(x, w):
        return jnp.dot(x.astype(jnp.bfloat16), w,
                       preferred_element_type=jnp.float32)

    h = jnp.maximum(mm(state, w1) + bias[:, :H], 0.0)
    h2 = jnp.maximum(mm(h, w2h[:, :H]) + bias[:, H:2 * H], 0.0)
    head = mm(h2, w2h[:, H:]) + bias[:, 2 * H:]
    mu, log_std = head[:, :A], head[:, A:]

    log_std = jnp.tanh(log_std)
    log_std = LOG_STD_MIN + 0.5 * (LOG_STD_MAX - LOG_STD_MIN) * (log_std + 1.0)
    std = jnp.exp(log_std)
    u = mu + std * eps
    y = jnp.tanh(u)
    base_lp = -0.5 * eps * eps - log_std - _HALF_LOG_2PI
    log_det = 2.0 * (_LOG2 - u - _softplus(-2.0 * u))
    log_pi = jnp.sum(base_lp - log_det, axis=-1, keepdims=True)
    return y, log_pi, jnp.tanh(mu)


if __name__ == "__main__":
    key = jax.random.PRNGKey(0)
    k_state, k_eps, k_params, k_state2, k_eps2 = jax.random.split(key, 5)

    B, OBS, HIDDEN, NUM_ACTIONS = 8, 16, 128, 4

    state = jax.random.normal(k_state, (B, OBS), jnp.float32)
    eps = jax.random.normal(k_eps, (B, NUM_ACTIONS), jnp.float32)
    params = init_params(k_params, OBS, HIDDEN, NUM_ACTIONS)

    # --- small batch: no-grid, fully VMEM-resident path ---
    sample, log_pi, mean = base_actor_forward(state, eps, params)
    jax.block_until_ready((sample, log_pi, mean))

    assert sample.shape == (B, NUM_ACTIONS)
    assert log_pi.shape == (B, 1)
    assert mean.shape == (B, NUM_ACTIONS)
    assert bool(jnp.all(jnp.isfinite(sample)))
    assert bool(jnp.all(jnp.isfinite(log_pi)))
    assert bool(jnp.all(jnp.isfinite(mean)))

    rs, rlp, rm = reference_forward(state, eps, params)
    assert bool(jnp.allclose(sample, rs, atol=1e-2, rtol=1e-2))
    assert bool(jnp.allclose(log_pi, rlp, atol=1e-2, rtol=1e-2))
    assert bool(jnp.allclose(mean, rm, atol=1e-2, rtol=1e-2))

    # --- larger batch: batch-tiled grid path with resident weights ---
    B2, TB = 64, 16
    state2 = jax.random.normal(k_state2, (B2, OBS), jnp.float32)
    eps2 = jax.random.normal(k_eps2, (B2, NUM_ACTIONS), jnp.float32)
    s2, lp2, m2 = base_actor_forward(state2, eps2, params, batch_tile=TB)
    jax.block_until_ready((s2, lp2, m2))

    rs2, rlp2, rm2 = reference_forward(state2, eps2, params)
    assert s2.shape == (B2, NUM_ACTIONS) and lp2.shape == (B2, 1)
    assert bool(jnp.all(jnp.isfinite(s2)))
    assert bool(jnp.all(jnp.isfinite(lp2)))
    assert bool(jnp.all(jnp.isfinite(m2)))
    assert bool(jnp.allclose(s2, rs2, atol=1e-2, rtol=1e-2))
    assert bool(jnp.allclose(lp2, rlp2, atol=1e-2, rtol=1e-2))
    assert bool(jnp.allclose(m2, rm2, atol=1e-2, rtol=1e-2))

    print("KERNEL_OK")
</pallas_src>

<mosaic_0001>
module attributes {stable_mosaic.version = 11 : i64} {
  func.func @actor_kernel(%arg0: memref<8x16xf32, #tpu.memory_space<vmem>>, %arg1: memref<8x4xf32, #tpu.memory_space<vmem>>, %arg2: memref<16x128xbf16, #tpu.memory_space<vmem>>, %arg3: memref<128x136xbf16, #tpu.memory_space<vmem>>, %arg4: memref<1x264xf32, #tpu.memory_space<vmem>>, %arg5: memref<8x9xf32, #tpu.memory_space<vmem>>) attributes {dimension_semantics = [], scalar_prefetch = 0 : i64, scratch_operands = 0 : i64, tpu.core_type = #tpu.core_type<tc>} {
    %c0 = arith.constant 0 : index
    %c0_0 = arith.constant 0 : index
    %0 = vector.load %arg0[%c0, %c0_0] : memref<8x16xf32, #tpu.memory_space<vmem>>, vector<8x16xf32>
    %1 = arith.truncf %0 : vector<8x16xf32> to vector<8x16xbf16>
    %c0_1 = arith.constant 0 : index
    %c0_2 = arith.constant 0 : index
    %2 = vector.load %arg2[%c0_1, %c0_2] : memref<16x128xbf16, #tpu.memory_space<vmem>>, vector<16x128xbf16>
    %cst = arith.constant dense<0.000000e+00> : vector<8x128xf32>
    %3 = tpu.matmul %1, %2, %cst {dimension_numbers = #tpu.dot_dimension_numbers<[1], [0], [0], [1], [0, 0, 1, 1], [], []>} : vector<8x16xbf16>, vector<16x128xbf16>, vector<8x128xf32> -> vector<8x128xf32>
    %c0_3 = arith.constant 0 : index
    %c0_4 = arith.constant 0 : index
    %4 = vector.load %arg4[%c0_3, %c0_4] : memref<1x264xf32, #tpu.memory_space<vmem>>, vector<1x128xf32>
    %5 = vector.broadcast %4 : vector<1x128xf32> to vector<8x128xf32>
    %6 = arith.addf %3, %5 : vector<8x128xf32>
    %cst_5 = arith.constant 0.000000e+00 : f32
    %7 = vector.broadcast %cst_5 : f32 to vector<8x128xf32>
    %8 = arith.maximumf %6, %7 : vector<8x128xf32>
    %c0_6 = arith.constant 0 : index
    %c0_7 = arith.constant 0 : index
    %9 = vector.load %arg3[%c0_6, %c0_7] : memref<128x136xbf16, #tpu.memory_space<vmem>>, vector<128x136xbf16>
    %10 = arith.truncf %8 : vector<8x128xf32> to vector<8x128xbf16>
    %11 = vector.extract_strided_slice %9 {offsets = [0, 0], sizes = [128, 128], strides = [1, 1]} : vector<128x136xbf16> to vector<128x128xbf16>
    %cst_8 = arith.constant dense<0.000000e+00> : vector<8x128xf32>
    %12 = tpu.matmul %10, %11, %cst_8 {dimension_numbers = #tpu.dot_dimension_numbers<[1], [0], [0], [1], [0, 0, 1, 1], [], []>} : vector<8x128xbf16>, vector<128x128xbf16>, vector<8x128xf32> -> vector<8x128xf32>
    %c0_9 = arith.constant 0 : index
    %c128 = arith.constant 128 : index
    %13 = vector.load %arg4[%c0_9, %c128] : memref<1x264xf32, #tpu.memory_space<vmem>>, vector<1x128xf32>
    %14 = vector.broadcast %13 : vector<1x128xf32> to vector<8x128xf32>
    %15 = arith.addf %12, %14 : vector<8x128xf32>
    %cst_10 = arith.constant 0.000000e+00 : f32
    %16 = vector.broadcast %cst_10 : f32 to vector<8x128xf32>
    %17 = arith.maximumf %15, %16 : vector<8x128xf32>
    %18 = arith.truncf %17 : vector<8x128xf32> to vector<8x128xbf16>
    %19 = vector.extract_strided_slice %9 {offsets = [0, 128], sizes = [128, 8], strides = [1, 1]} : vector<128x136xbf16> to vector<128x8xbf16>
    %cst_11 = arith.constant dense<0.000000e+00> : vector<8x8xf32>
    %20 = tpu.matmul %18, %19, %cst_11 {dimension_numbers = #tpu.dot_dimension_numbers<[1], [0], [0], [1], [0, 0, 1, 1], [], []>} : vector<8x128xbf16>, vector<128x8xbf16>, vector<8x8xf32> -> vector<8x8xf32>
    %c0_12 = arith.constant 0 : index
    %c256 = arith.constant 256 : index
    %21 = vector.load %arg4[%c0_12, %c256] : memref<1x264xf32, #tpu.memory_space<vmem>>, vector<1x8xf32>
    %22 = vector.broadcast %21 : vector<1x8xf32> to vector<8x8xf32>
    %23 = arith.addf %20, %22 : vector<8x8xf32>
    %24 = vector.extract_strided_slice %23 {offsets = [0, 0], sizes = [8, 4], strides = [1, 1]} : vector<8x8xf32> to vector<8x4xf32>
    %25 = vector.extract_strided_slice %23 {offsets = [0, 4], sizes = [8, 4], strides = [1, 1]} : vector<8x8xf32> to vector<8x4xf32>
    %26 = math.tanh %25 : vector<8x4xf32>
    %cst_13 = arith.constant 1.000000e+00 : f32
    %27 = vector.broadcast %cst_13 : f32 to vector<8x4xf32>
    %28 = arith.addf %26, %27 : vector<8x4xf32>
    %cst_14 = arith.constant 1.100000e+01 : f32
    %29 = vector.broadcast %cst_14 : f32 to vector<8x4xf32>
    %30 = arith.mulf %29, %28 : vector<8x4xf32>
    %cst_15 = arith.constant -2.000000e+01 : f32
    %31 = vector.broadcast %cst_15 : f32 to vector<8x4xf32>
    %32 = arith.addf %31, %30 : vector<8x4xf32>
    %33 = math.exp %32 : vector<8x4xf32>
    %c0_16 = arith.constant 0 : index
    %c0_17 = arith.constant 0 : index
    %34 = vector.load %arg1[%c0_16, %c0_17] : memref<8x4xf32, #tpu.memory_space<vmem>>, vector<8x4xf32>
    %35 = arith.mulf %33, %34 : vector<8x4xf32>
    %36 = arith.addf %24, %35 : vector<8x4xf32>
    %37 = math.tanh %36 : vector<8x4xf32>
    %cst_18 = arith.constant -5.000000e-01 : f32
    %38 = vector.broadcast %cst_18 : f32 to vector<8x4xf32>
    %39 = arith.mulf %38, %34 : vector<8x4xf32>
    %40 = arith.mulf %39, %34 : vector<8x4xf32>
    %41 = arith.subf %40, %32 : vector<8x4xf32>
    %cst_19 = arith.constant 0.918938517 : f32
    %42 = vector.broadcast %cst_19 : f32 to vector<8x4xf32>
    %43 = arith.subf %41, %42 : vector<8x4xf32>
    %cst_20 = arith.constant 0.693147182 : f32
    %44 = vector.broadcast %cst_20 : f32 to vector<8x4xf32>
    %45 = arith.subf %44, %36 : vector<8x4xf32>
    %cst_21 = arith.constant -2.000000e+00 : f32
    %46 = vector.broadcast %cst_21 : f32 to vector<8x4xf32>
    %47 = arith.mulf %46, %36 : vector<8x4xf32>
    %cst_22 = arith.constant 0.000000e+00 : f32
    %48 = vector.broadcast %cst_22 : f32 to vector<8x4xf32>
    %49 = arith.maximumf %47, %48 : vector<8x4xf32>
    %50 = math.absf %47 : vector<8x4xf32>
    %cst_23 = arith.constant 0.000000e+00 : f32
    %51 = vector.broadcast %cst_23 : f32 to vector<8x4xf32>
    %52 = arith.subf %51, %50 : vector<8x4xf32>
    %53 = math.exp %52 : vector<8x4xf32>
    %54 = math.log1p %53 : vector<8x4xf32>
    %55 = arith.addf %49, %54 : vector<8x4xf32>
    %56 = arith.subf %45, %55 : vector<8x4xf32>
    %cst_24 = arith.constant 2.000000e+00 : f32
    %57 = vector.broadcast %cst_24 : f32 to vector<8x4xf32>
    %58 = arith.mulf %57, %56 : vector<8x4xf32>
    %59 = arith.subf %43, %58 : vector<8x4xf32>
    %cst_25 = arith.constant dense<0.000000e+00> : vector<8xf32>
    %60 = vector.multi_reduction <add>, %59, %cst_25 [1] : vector<8x4xf32> to vector<8xf32>
    %61 = vector.shape_cast %60 : vector<8xf32> to vector<8x1xf32>
    %62 = math.tanh %24 : vector<8x4xf32>
    %63 = tpu.concatenate %37, %62, %61 in 1 : vector<8x4xf32>, vector<8x4xf32>, vector<8x1xf32> -> vector<8x9xf32>
    %c0_26 = arith.constant 0 : index
    %c0_27 = arith.constant 0 : index
    %64 = vector.load %arg5[%c0_26, %c0_27] : memref<8x9xf32, #tpu.memory_space<vmem>>, vector<8x9xf32>
    tpu.vector_store %arg5[%c0_26, %c0_27], %63 {strides = array<i32>} : memref<8x9xf32, #tpu.memory_space<vmem>>, vector<8x9xf32>,
    return
  }
}

</mosaic_0001>

<llo_original>
// kernel: tpu_custom_call.1
$region0: #{tpu_custom_call.1}
  #allocation0 [shape = 'u32[]', space=smem, size = 0x4, offset = 0x4, fixed_abs, tag = 'smem constant byte address 0x4 - core index']
  #allocation1 [shape = 'u32[144,128]{1,0:T(1,128)}', space=vmem, size = 0x12000, scoped, tag = 'internal scratch']
  %s0 = inlined_call_operand.vmem [shape: f32[8,16], index: 0, kind: input, shape index: {}]
  %s1 = inlined_call_operand.vmem [shape: f32[8,4], index: 1, kind: input, shape index: {}]
  %s2 = inlined_call_operand.vmem [shape: bf16[16,128], index: 2, kind: input, shape index: {}]
  %s3 = inlined_call_operand.vmem [shape: bf16[128,136], index: 3, kind: input, shape index: {}]
  %s4 = inlined_call_operand.vmem [shape: f32[1,264], index: 4, kind: input, shape index: {}]
  %s5 = inlined_call_operand.hbm [shape: f32[8,9], index: 5, kind: output, shape index: {}]
  %s6 = sld [smem:[#allocation0]]
  $region30: #{tpu_custom_call.1} parent=0
    _
  %s8 = ssub.s32 1, %s6
  %s9 = scalar_select 0, %s8, %s6
  $region1: #{tpu_custom_call.1} parent=0
    #allocation2 [shape = 'u8[4096]{0}', space=vmem, size = 0x1000, scoped, tag = 'output window, operand 0, single buffered']
    #allocation3 [shape = 's32[1]{0}', space=sflag, size = 0x4, scoped, tag = 'scoped memory for tpu_custom_call.1']
    %10 = vsyncpa [#allocation3], 0
    // Predicated region
    $region2: #{tpu_custom_call.1} parent=1 // pred_check
      _
    $region3: #{tpu_custom_call.1} parent=1 // pred_check_branch
      %12 = sbr.rel (0) target = $region5
    $region4: #{tpu_custom_call.1} parent=1 // pred_region
      _
    $region5: #{tpu_custom_call.1} parent=1 // pred_fallthru
      _
    // Predicated region
    $region6: #{tpu_custom_call.1} parent=1 // pred_check
      _
    $region7: #{tpu_custom_call.1} parent=1 // pred_check_branch
      %14 = sbr.rel (0) target = $region9
    $region8: #{tpu_custom_call.1} parent=1 // pred_region
      _
    $region9: #{tpu_custom_call.1} parent=1 // pred_fallthru
      _
    // Predicated region
    $region10: #{tpu_custom_call.1} parent=1 // pred_check
      _
    $region11: #{tpu_custom_call.1} parent=1 // pred_check_branch
      %16 = sbr.rel (0) target = $region13
    $region12: #{tpu_custom_call.1} parent=1 // pred_region
      _
    $region13: #{tpu_custom_call.1} parent=1 // pred_fallthru
      _
    // Predicated region
    $region14: #{tpu_custom_call.1} parent=1 // pred_check
      _
    $region15: #{tpu_custom_call.1} parent=1 // pred_check_branch
      %18 = sbr.rel (0) target = $region17
    $region16: #{tpu_custom_call.1} parent=1 // pred_region
      _
    $region17: #{tpu_custom_call.1} parent=1 // pred_fallthru
      _
    // Predicated region
    $region18: #{tpu_custom_call.1} parent=1 // pred_check
      _
    $region19: #{tpu_custom_call.1} parent=1 // pred_check_branch
      %20 = sbr.rel (0) target = $region21
    $region20: #{tpu_custom_call.1} parent=1 // pred_region
      _
    $region21: #{tpu_custom_call.1} parent=1 // pred_fallthru
      _
    %v22 = vld [vmem:[%s0] sm:$0xff]
    %v23 = vpack.c.bf16 %v22, %v22
    %v24 = vld [vmem:[%s2] sm:$0xf]
    %v25 = vld [vmem:[%s2 + $0x4] sm:$0xf]
    %v26 = vld [vmem:[%s4] sm:$0x1]
    %v28 = vlaneseq
    %v29 = vshrl.u32 %v28, 7
    %v30 = vsub.s32 0, %v29
    %v31 = vrot.slane %v26, %v30
    %v35 = vunpack.c.l.b16 %v24
    %v36 = vunpack.c.l.b16 %v25
    %v37 = vpack.c.b16 %v36, %v35
    %vm39 = vcmask 130048
    %v41 = vsel %vm39, %v23, 0
    %43 = vmatprep.subr.bf16.mxu0 0
    %44 = vmatpush1.bf16.msra.mxu0 %v37
    %45 = vmatprep.subr.bf16.mxu0 0
    %46 = vmatpush1.bf16.msra.mxu0 0
    %47 = vmatprep.subr.bf16.mxu0 0
    %48 = vmatpush1.bf16.msra.mxu0 0
    %49 = vmatprep.subr.bf16.mxu0 0
    %50 = vmatpush1.bf16.msra.mxu0 0
    %51 = vmatprep.subr.bf16.mxu0 0
    %52 = vmatpush1.bf16.msra.mxu0 0
    %53 = vmatprep.subr.bf16.mxu0 0
    %54 = vmatpush1.bf16.msra.mxu0 0
    %55 = vmatprep.subr.bf16.mxu0 0
    %56 = vmatpush1.bf16.msra.mxu0 0
    %57 = vmatprep.subr.bf16.mxu0 0
    %58 = vmatpush1.bf16.msra.mxu0 0
    %59 = vmatprep.subr.bf16.mxu0 0
    %60 = vmatpush1.bf16.msra.mxu0 0
    %61 = vmatprep.subr.bf16.mxu0 0
    %62 = vmatpush1.bf16.msra.mxu0 0
    %63 = vmatprep.subr.bf16.mxu0 0
    %64 = vmatpush1.bf16.msra.mxu0 0
    %65 = vmatprep.subr.bf16.mxu0 0
    %66 = vmatpush1.bf16.msra.mxu0 0
    %67 = vmatprep.subr.bf16.mxu0 0
    %68 = vmatpush1.bf16.msra.mxu0 0
    %69 = vmatprep.subr.bf16.mxu0 0
    %70 = vmatpush1.bf16.msra.mxu0 0
    %71 = vmatprep.subr.bf16.mxu0 0
    %72 = vmatpush1.bf16.msra.mxu0 0
    %73 = vmatprep.subr.bf16.mxu0 0
    %74 = vmatpush1.bf16.msra.mxu0 0
    %75 = vmatprep.mubr.bf16.mxu0 0
    %76 = vmatmul.mubr.bf16.gmra.mrb[0].mxu0 %v41
    %v77 = vpop.f32.mrb[0].mxu0
    %v78 = vadd.f32 %v31, %v77
    %v79 = vpop.f32.mrb[0].mxu0
    %v80 = vpop.f32.mrb[0].mxu0
    %v81 = vpop.f32.mrb[0].mxu0
    %82 = vdwg.mxu0
    %v83 = vmax.f32 %v78, 0.0
    %v84 = vld [vmem:[%s3] sm:$0xff]
    %v85 = vld [vmem:[%s3 + $0x8] sm:$0xff]
    %v86 = vld [vmem:[%s3 + $0x10] sm:$0xff]
    %v87 = vld [vmem:[%s3 + $0x18] sm:$0xff]
    %v88 = vld [vmem:[%s3 + $0x20] sm:$0xff]
    %v89 = vld [vmem:[%s3 + $0x28] sm:$0xff]
    %v90 = vld [vmem:[%s3 + $0x30] sm:$0xff]
    %v91 = vld [vmem:[%s3 + $0x38] sm:$0xff]
    %v92 = vld [vmem:[%s3 + $0x40] sm:$0xff]
    %v93 = vld [vmem:[%s3 + $0x48] sm:$0xff]
    %v94 = vld [vmem:[%s3 + $0x50] sm:$0xff]
    %v95 = vld [vmem:[%s3 + $0x58] sm:$0xff]
    %v96 = vld [vmem:[%s3 + $0x60] sm:$0xff]
    %v97 = vld [vmem:[%s3 + $0x68] sm:$0xff]
    %v98 = vld [vmem:[%s3 + $0x70] sm:$0xff]
    %v99 = vld [vmem:[%s3 + $0x78] sm:$0xff]
    %v100 = vpack.c.bf16 %v83, %v83
    %v101 = vld [vmem:[%s4 + $0x1] sm:$0x1]
    %v103 = vlaneseq
    %v104 = vshrl.u32 %v103, 7
    %v105 = vsub.s32 0, %v104
    %v106 = vrot.slane %v101, %v105
    %v124 = vunpack.c.l.b16 %v84
    %v125 = vunpack.c.l.b16 %v85
    %v126 = vunpack.c.l.b16 %v86
    %v127 = vunpack.c.l.b16 %v87
    %v128 = vunpack.c.l.b16 %v88
    %v129 = vunpack.c.l.b16 %v89
    %v130 = vunpack.c.l.b16 %v90
    %v131 = vunpack.c.l.b16 %v91
    %v132 = vunpack.c.l.b16 %v92
    %v133 = vunpack.c.l.b16 %v93
    %v134 = vunpack.c.l.b16 %v94
    %v135 = vunpack.c.l.b16 %v95
    %v136 = vunpack.c.l.b16 %v96
    %v137 = vunpack.c.l.b16 %v97
    %v138 = vunpack.c.l.b16 %v98
    %v139 = vunpack.c.l.b16 %v99
    %v140 = vpack.c.b16 %v125, %v124
    %v141 = vpack.c.b16 %v127, %v126
    %v142 = vpack.c.b16 %v129, %v128
    %v143 = vpack.c.b16 %v131, %v130
    %v144 = vpack.c.b16 %v133, %v132
    %v145 = vpack.c.b16 %v135, %v134
    %v146 = vpack.c.b16 %v137, %v136
    %v147 = vpack.c.b16 %v139, %v138
    %156 = vmatprep.subr.bf16.mxu0 0
    %157 = vmatpush1.bf16.msra.mxu0 %v140
    %158 = vmatprep.subr.bf16.mxu0 0
    %159 = vmatpush1.bf16.msra.mxu0 %v141
    %160 = vmatprep.subr.bf16.mxu0 0
    %161 = vmatpush1.bf16.msra.mxu0 %v142
    %162 = vmatprep.subr.bf16.mxu0 0
    %163 = vmatpush1.bf16.msra.mxu0 %v143
    %164 = vmatprep.subr.bf16.mxu0 0
    %165 = vmatpush1.bf16.msra.mxu0 %v144
    %166 = vmatprep.subr.bf16.mxu0 0
    %167 = vmatpush1.bf16.msra.mxu0 %v145
    %168 = vmatprep.subr.bf16.mxu0 0
    %169 = vmatpush1.bf16.msra.mxu0 %v146
    %170 = vmatprep.subr.bf16.mxu0 0
    %171 = vmatpush1.bf16.msra.mxu0 %v147
    %172 = vmatprep.subr.bf16.mxu0 0
    %173 = vmatpush1.bf16.msra.mxu0 0
    %174 = vmatprep.subr.bf16.mxu0 0
    %175 = vmatpush1.bf16.msra.mxu0 0
    %176 = vmatprep.subr.bf16.mxu0 0
    %177 = vmatpush1.bf16.msra.mxu0 0
    %178 = vmatprep.subr.bf16.mxu0 0
    %179 = vmatpush1.bf16.msra.mxu0 0
    %180 = vmatprep.subr.bf16.mxu0 0
    %181 = vmatpush1.bf16.msra.mxu0 0
    %182 = vmatprep.subr.bf16.mxu0 0
    %183 = vmatpush1.bf16.msra.mxu0 0
    %184 = vmatprep.subr.bf16.mxu0 0
    %185 = vmatpush1.bf16.msra.mxu0 0
    %186 = vmatprep.subr.bf16.mxu0 0
    %187 = vmatpush1.bf16.msra.mxu0 0
    %188 = vmatprep.mubr.bf16.mxu0 0
    %189 = vmatmul.mubr.bf16.gmra.mrb[0].mxu0 %v100
    %v190 = vpop.f32.mrb[0].mxu0
    %v191 = vadd.f32 %v106, %v190
    %v192 = vpop.f32.mrb[0].mxu0
    %v193 = vpop.f32.mrb[0].mxu0
    %v194 = vpop.f32.mrb[0].mxu0
    %195 = vdwg.mxu0
    %v196 = vmax.f32 %v191, 0.0
    %v197 = vpack.c.bf16 %v196, %v196
    %v198 = vld [vmem:[%s4 + $0x2] sm:$0x1]
    %v200 = vlaneseq
    %v201 = vshrl.u32 %v200, 7
    %v202 = vsub.s32 0, %v201
    %v203 = vrot.slane %v198, %v202
    %v205 = vunpack.c.h.b16 %v84
    %v206 = vunpack.c.h.b16 %v85
    %v207 = vunpack.c.h.b16 %v86
    %v208 = vunpack.c.h.b16 %v87
    %v209 = vunpack.c.h.b16 %v88
    %v210 = vunpack.c.h.b16 %v89
    %v211 = vunpack.c.h.b16 %v90
    %v212 = vunpack.c.h.b16 %v91
    %v213 = vunpack.c.h.b16 %v92
    %v214 = vunpack.c.h.b16 %v93
    %v215 = vunpack.c.h.b16 %v94
    %v216 = vunpack.c.h.b16 %v95
    %v217 = vunpack.c.h.b16 %v96
    %v218 = vunpack.c.h.b16 %v97
    %v219 = vunpack.c.h.b16 %v98
    %v220 = vunpack.c.h.b16 %v99
    %v221 = vpack.c.b16 %v206, %v205
    %v222 = vpack.c.b16 %v208, %v207
    %v223 = vpack.c.b16 %v210, %v209
    %v224 = vpack.c.b16 %v212, %v211
    %v225 = vpack.c.b16 %v214, %v213
    %v226 = vpack.c.b16 %v216, %v215
    %v227 = vpack.c.b16 %v218, %v217
    %v228 = vpack.c.b16 %v220, %v219
    %237 = vmatprep.subr.bf16.mxu0 0
    %238 = vmatpush1.bf16.msra.mxu0 %v221
    %239 = vmatprep.subr.bf16.mxu0 0
    %240 = vmatpush1.bf16.msra.mxu0 %v222
    %241 = vmatprep.subr.bf16.mxu0 0
    %242 = vmatpush1.bf16.msra.mxu0 %v223
    %243 = vmatprep.subr.bf16.mxu0 0
    %244 = vmatpush1.bf16.msra.mxu0 %v224
    %245 = vmatprep.subr.bf16.mxu0 0
    %246 = vmatpush1.bf16.msra.mxu0 %v225
    %247 = vmatprep.subr.bf16.mxu0 0
    %248 = vmatpush1.bf16.msra.mxu0 %v226
    %249 = vmatprep.subr.bf16.mxu0 0
    %250 = vmatpush1.bf16.msra.mxu0 %v227
    %251 = vmatprep.subr.bf16.mxu0 0
    %252 = vmatpush1.bf16.msra.mxu0 %v228
    %253 = vmatprep.subr.bf16.mxu0 0
    %254 = vmatpush1.bf16.msra.mxu0 0
    %255 = vmatprep.subr.bf16.mxu0 0
    %256 = vmatpush1.bf16.msra.mxu0 0
    %257 = vmatprep.subr.bf16.mxu0 0
    %258 = vmatpush1.bf16.msra.mxu0 0
    %259 = vmatprep.subr.bf16.mxu0 0
    %260 = vmatpush1.bf16.msra.mxu0 0
    %261 = vmatprep.subr.bf16.mxu0 0
    %262 = vmatpush1.bf16.msra.mxu0 0
    %263 = vmatprep.subr.bf16.mxu0 0
    %264 = vmatpush1.bf16.msra.mxu0 0
    %265 = vmatprep.subr.bf16.mxu0 0
    %266 = vmatpush1.bf16.msra.mxu0 0
    %267 = vmatprep.subr.bf16.mxu0 0
    %268 = vmatpush1.bf16.msra.mxu0 0
    %269 = vmatprep.mubr.bf16.mxu0 0
    %270 = vmatmul.mubr.bf16.gmra.mrb[0].mxu0 %v197
    %v271 = vpop.f32.mrb[0].mxu0
    %v272 = vadd.f32 %v203, %v271
    %v273 = vpop.f32.mrb[0].mxu0
    %v274 = vpop.f32.mrb[0].mxu0
    %v275 = vpop.f32.mrb[0].mxu0
    %276 = vdwg.mxu0
    %v277 = vtanh.pop %v272
    %v278 = vadd.f32 %v277, 1.0
    %v279 = vmul.f32 %v278, 11.0
    %v280 = vadd.f32 %v279, -20.0
    %v281 = vmul.f32 %v280, 1.442695
    %v282 = vpow.pop %v281
    %v283 = vld [vmem:[%s1] sm:$0xff]
    %285 = vrot.lane.b32.xlu0 %v283, 4
    %v286 = vpop.permute.xlu0 %285
    %v288 = vmul.f32 %v282, %v286
    %290 = vrot.lane.b32.xlu0 %v288, 124
    %v291 = vpop.permute.xlu0 %290
    %v293 = vadd.f32 %v272, %v291
    %v294 = vtanh.pop %v293
    %v295 = vmul.f32 %v283, -0.5
    %v296 = vmul.f32 %v295, %v283
    %298 = vrot.lane.b32.xlu0 %v280, 124
    %v299 = vpop.permute.xlu0 %298
    %v301 = vsub.f32 %v296, %v299
    %v302 = vsub.f32 %v301, 0.9189385
    %v303 = vsub.f32 0.6931472, %v293
    %v304 = vmul.f32 %v293, -2.0
    %v305 = vmax.f32 %v304, 0.0
    %v306 = vand.u32 2147483647, %v304
    %v307 = vsub.f32 0.0, %v306
    %v308 = vmul.f32 %v307, 1.442695
    %v309 = vpow.pop %v308
    %v310 = vadd.f32 %v309, 1.0
    %v311 = vlog2.pop %v310
    %v312 = vmul.f32 %v311, 0.6931472
    %v313 = vmul.f32 -0.5, %v309
    %v314 = vadd.f32 %v313, 1.0
    %v315 = vmul.f32 %v314, %v309
    %v316 = vand.u32 2147483647, %v309
    %vm317 = vcmp.lt.f32.partialorder %v316, 0.0004427343
    %v318 = vsel %vm317, %v315, %v312
    %v319 = vadd.f32 %v305, %v318
    %v320 = vsub.f32 %v303, %v319
    %v321 = vmul.f32 %v320, 2.0
    %v322 = vsub.f32 %v302, %v321
    %vm323 = vcmask 31744
    %v324 = vsel %vm323, %v322, 0.0
    %325 = vadd.xlane.f32.xlu0 %v324
    %v326 = vpop.xlane.xlu0 %325
    %328 = vrot.lane.b32.xlu0 %v277, 4
    %v329 = vpop.permute.xlu0 %328
    %v331 = vsel %vm323, %v294, %v329
    %vm332 = vcmask 64512
    %v333 = vsel %vm332, %v331, %v326
    %vm334 = vcmask 72704
    %335 = vst.msk [vmem:[#allocation2] sm:$0xff] %vm334, %v333
    // Predicated region
    $region22: #{tpu_custom_call.1} parent=1 // pred_check
      _
    $region23: #{tpu_custom_call.1} parent=1 // pred_check_branch
      %337 = sbr.rel (0) target = $region25
    $region24: #{tpu_custom_call.1} parent=1 // pred_region
      %s339 = ssub.s32 128, 128
      %340 = vsyncadd [#allocation3], %s339
      %s342 = sshll.u32 [#allocation2], 4
      %s343 = int_to_ptr.vmem [resolvable:$true] %s342
      %345 = dma.vmem_to_hbm [thread:$0]  %s343, 128, %s5, [#allocation3]
    $region25: #{tpu_custom_call.1} parent=1 // pred_fallthru
      _
    // Predicated region
    $region26: #{tpu_custom_call.1} parent=1 // pred_check
      _
    $region27: #{tpu_custom_call.1} parent=1 // pred_check_branch
      %347 = sbr.rel (0) target = $region29
    $region28: #{tpu_custom_call.1} parent=1 // pred_region
      %348 = dma.done [#allocation3], 128
    $region29: #{tpu_custom_call.1} parent=1 // pred_fallthru
      _
    %349 = vsyncpa [#allocation3], 1

</llo_original>
